<compile_context>
chip_gen: v6e
topology: v6e:2x2x1
jax: 0.10.0
libtpu: 0.0.40
codegen_flags: <defaults>
</compile_context>

<pallas_src>
import functools

import jax
import jax.numpy as jnp
import numpy as np
from jax.experimental import pallas as pl
from jax.experimental.pallas import tpu as pltpu


# ----------------------------------------------------------------------------------
# Kernel
# ----------------------------------------------------------------------------------
def _sdpa_kernel(q_ref, k_ref, v_ref, o_ref, *, scale, compute_dtype):
    # Blocks: q (Bt, Lq, Dq), k (Bt, Lk, Dk), v (Bt, Lv, Dv); out (Bt, Dv).
    cd = compute_dtype
    q = q_ref[...].astype(cd)                                   # (Bt, Lq, Dq)
    k = k_ref[...]                                              # (Bt, Lk, Dk)
    v = v_ref[...].astype(cd)                                   # (Bt, Lv, Dv)

    # sum_k(Q @ K^T)[b, i] == sum_d Q[b,i,d] * (sum_k K[b,k,d]) -> never build (Lq, Lk).
    ksum = jnp.sum(k, axis=1, keepdims=True, dtype=jnp.float32)  # (Bt, 1, Dk), f32 acc
    if scale:  # truthiness check, matches torch's `if scale:` (scale=0.0 skips scaling)
        ksum = ksum * jnp.float32(scale)
    ksum = ksum.astype(cd)

    # Row logits stay sublane-major: (Bt, Lq, 1) with D on lanes -> no XLU relayouts.
    a = jnp.sum(q * ksum, axis=-1, keepdims=True, dtype=jnp.float32)   # (Bt, Lq, 1)

    # Numerically stable softmax over Lq (axis=1), all stats kept as (Bt, *, 1) f32.
    m = jnp.max(a, axis=1, keepdims=True)                        # (Bt, 1, 1)
    e = jnp.exp(a - m)                                           # (Bt, Lq, 1)
    s = jnp.sum(e, axis=1, keepdims=True)                        # (Bt, 1, 1)
    inv = pl.reciprocal(s, approx=True)                          # EUP slot
    inv = inv * (2.0 - s * inv)                                  # one Newton step -> ~f32
    w = (e * inv).astype(cd)                                     # (Bt, Lq, 1)

    # context = softmax_row @ V as a lane-broadcast multiply + sublane reduction
    # (no M=1 MXU matmul needed).
    ctx = jnp.sum(w * v, axis=1, dtype=jnp.float32)              # (Bt, Dv)
    o_ref[...] = ctx.astype(o_ref.dtype)


# ----------------------------------------------------------------------------------
# Wrapper
# ----------------------------------------------------------------------------------
def _device_kind():
    try:
        return jax.devices()[0].device_kind.lower()
    except Exception:
        return ""


def _generation_params():
    """(block_budget_bytes, vmem_ceiling_bytes, min_parallel_blocks) for this TPU."""
    kind = _device_kind()
    if "v7" in kind or "7x" in kind:
        # v7x: 64 MiB VMEM per TensorCore, 2 TCs -> smaller blocks, >=2 grid steps
        # so the 'parallel' axis is actually sharded across both cores.
        return 20 << 20, 56 << 20, 2
    if "v5" in kind or "v6" in kind:
        # v5e / v6e: 128 MiB VMEM, single TensorCore -> few, large blocks.
        return 40 << 20, 112 << 20, 1
    # Unknown / older generation: be conservative.
    return 16 << 20, 48 << 20, 2


def _pick_compute_dtype(in_dtype):
    if jnp.dtype(in_dtype) == jnp.dtype(jnp.bfloat16):
        kind = _device_kind()
        # v6e / v7x have native bf16 VPU + EUP; keep f32 math on v5e and older.
        if "v6" in kind or "v7" in kind or "7x" in kind:
            return jnp.bfloat16
    return jnp.float32


def scaled_dot_product_attention(Q, K, V, scale=None, *, block_batch=None):
    """Pallas TPU implementation of Scaled_Dot_Product_Attention.forward.

    Q: [B, Lq, Dq], K: [B, Lk, Dk], V: [B, Lv, Dv] -> context [B, 1, Dv].
    """
    B, Lq, Dq = Q.shape
    _, Lk, Dk = K.shape
    _, Lv, Dv = V.shape
    assert Dq == Dk, "dim_Q must equal dim_K (required by Q @ K^T)"
    assert Lq == Lv, "len_Q must equal len_V (required by attention @ V)"

    compute_dtype = _pick_compute_dtype(Q.dtype)

    # --- VMEM accounting: double-buffered pipelined blocks + in-kernel working set --
    in_size = jnp.dtype(Q.dtype).itemsize
    cd_size = jnp.dtype(compute_dtype).itemsize
    io_per_batch = 2 * (Lq * Dq + Lk * Dk + Lv * Dv + Dv) * in_size
    # casts of q/v, the q*ksum and w*v broadcast temporaries, f32 softmax stats
    # (generous over-estimate).
    work_per_batch = (2 * Lq * Dq + 2 * Lv * Dv + Lq * Dv) * cd_size \
                     + (Lq * Dv + 4 * Lq + Dk + Dv) * 4
    per_batch = io_per_batch + work_per_batch

    budget, vmem_ceiling, min_blocks = _generation_params()

    # --- pick the batch-chunk size bt ------------------------------------------------
    b_ceil8 = ((B + 7) // 8) * 8
    if block_batch is None:
        bt = max(8, (budget // per_batch) // 8 * 8)   # multiple of 8 (sublane packing)
        bt = min(bt, b_ceil8)                         # don't over-size tiny batches
        if min_blocks >= 2 and B > 8:
            # Guarantee >=2 'parallel' grid steps on 2-TC parts (v7x).
            half8 = ((-(-B // 2)) + 7) // 8 * 8
            bt = min(bt, half8)
        if bt >= b_ceil8:
            bt = B                                    # single exact block, no boundary
    else:
        bt = int(block_batch)
    num_blocks = -(-B // bt)

    est_bytes = bt * per_batch + (1 << 20)            # + misc compiler scratch
    if est_bytes > vmem_ceiling:
        # TODO(synk): add an L-tiling fallback (second 'arbitrary' grid axis over Lk/Lq
        # with an online softmax / accumulator) for very long sequences.
        raise ValueError(
            f"Per-step VMEM estimate {est_bytes / 2**20:.1f} MiB exceeds the "
            f"{vmem_ceiling / 2**20:.0f} MiB ceiling for this TPU generation; "
            "sequence length too large for the single-chunk layout.")
    vmem_limit = int(min(vmem_ceiling, max(32 << 20, (est_bytes * 3) // 2)))

    kernel = functools.partial(_sdpa_kernel, scale=scale, compute_dtype=compute_dtype)
    out2d = pl.pallas_call(
        kernel,
        out_shape=jax.ShapeDtypeStruct((B, Dv), Q.dtype),
        grid_spec=pltpu.PrefetchScalarGridSpec(
            num_scalar_prefetch=0,
            grid=(num_blocks,),
            in_specs=[
                pl.BlockSpec((bt, Lq, Dq), lambda b: (b, 0, 0)),
                pl.BlockSpec((bt, Lk, Dk), lambda b: (b, 0, 0)),
                pl.BlockSpec((bt, Lv, Dv), lambda b: (b, 0, 0)),
            ],
            out_specs=pl.BlockSpec((bt, Dv), lambda b: (b, 0)),
        ),
        compiler_params=pltpu.CompilerParams(
            dimension_semantics=("parallel",),
            vmem_limit_bytes=vmem_limit,
        ),
    )(Q, K, V)

    # Lane-dense 2-D output from the kernel; restore the [B, 1, Dv] shape here.
    return out2d.reshape(B, 1, Dv)


# ----------------------------------------------------------------------------------
# Pure-JAX reference mirroring the PyTorch code line-by-line.
# ----------------------------------------------------------------------------------
def _reference(Q, K, V, scale=None):
    attention = jnp.matmul(Q, jnp.transpose(K, (0, 2, 1)))
    if scale:
        attention = attention * scale
    attention = jnp.sum(attention, axis=-1)
    attention = jax.nn.softmax(attention, axis=-1)[:, None, :]
    return jnp.matmul(attention, V)


if __name__ == "__main__":
    B, L, D = 2, 8, 32  # batch, seq len (len_Q == len_K == len_V), hidden dim

    key = jax.random.PRNGKey(0)
    kq, kk, kv = jax.random.split(key, 3)
    Q = jax.random.normal(kq, (B, L, D), dtype=jnp.float32)
    K = jax.random.normal(kk, (B, L, D), dtype=jnp.float32)
    V = jax.random.normal(kv, (B, L, D), dtype=jnp.float32)

    scale = 1.0 / float(np.sqrt(D))

    out = jax.block_until_ready(scaled_dot_product_attention(Q, K, V, scale=scale))
    ref = _reference(Q, K, V, scale=scale)
    np.testing.assert_allclose(np.asarray(out), np.asarray(ref), atol=1e-4, rtol=1e-4)

    # scale=None and scale=0.0 both take torch's falsy branch (no scaling).
    for s in (None, 0.0):
        o = jax.block_until_ready(scaled_dot_product_attention(Q, K, V, scale=s))
        r = _reference(Q, K, V, scale=s)
        np.testing.assert_allclose(np.asarray(o), np.asarray(r), atol=1e-4, rtol=1e-4)

    # Ragged small batch: single exact block (bt == B), no padding copies.
    kq2, kk2, kv2 = jax.random.split(jax.random.PRNGKey(1), 3)
    Q2 = jax.random.normal(kq2, (5, L, D), dtype=jnp.float32)
    K2 = jax.random.normal(kk2, (5, L, D), dtype=jnp.float32)
    V2 = jax.random.normal(kv2, (5, L, D), dtype=jnp.float32)
    o2 = jax.block_until_ready(scaled_dot_product_attention(Q2, K2, V2, scale=scale))
    r2 = _reference(Q2, K2, V2, scale=scale)
    np.testing.assert_allclose(np.asarray(o2), np.asarray(r2), atol=1e-4, rtol=1e-4)

    # Multi-step grid with a partial tail block (exercises the no-pad boundary path).
    kq3, kk3, kv3 = jax.random.split(jax.random.PRNGKey(2), 3)
    Q3 = jax.random.normal(kq3, (20, L, D), dtype=jnp.float32)
    K3 = jax.random.normal(kk3, (20, L, D), dtype=jnp.float32)
    V3 = jax.random.normal(kv3, (20, L, D), dtype=jnp.float32)
    o3 = jax.block_until_ready(
        scaled_dot_product_attention(Q3, K3, V3, scale=scale, block_batch=8))
    r3 = _reference(Q3, K3, V3, scale=scale)
    np.testing.assert_allclose(np.asarray(o3), np.asarray(r3), atol=1e-4, rtol=1e-4)

    # bf16 inputs: bf16 VPU math + f32 accumulation on v6e/v7x, f32 fallback on v5e.
    Qb, Kb, Vb = (x.astype(jnp.bfloat16) for x in (Q3, K3, V3))
    ob = jax.block_until_ready(scaled_dot_product_attention(Qb, Kb, Vb, scale=scale))
    rb = _reference(Qb.astype(jnp.float32), Kb.astype(jnp.float32),
                    Vb.astype(jnp.float32), scale=scale)
    np.testing.assert_allclose(np.asarray(ob.astype(jnp.float32)), np.asarray(rb),
                               atol=1e-1, rtol=1e-1)

    print("KERNEL_OK")
</pallas_src>

<mosaic_0001>
module attributes {stable_mosaic.version = 11 : i64} {
  func.func @_sdpa_kernel(%arg0: i32, %arg1: memref<2x8x32xf32, #tpu.memory_space<vmem>>, %arg2: memref<2x8x32xf32, #tpu.memory_space<vmem>>, %arg3: memref<2x8x32xf32, #tpu.memory_space<vmem>>, %arg4: memref<2x32xf32, #tpu.memory_space<vmem>>) attributes {dimension_semantics = [#tpu.dimension_semantics<parallel>], iteration_bounds = array<i64: 1>, scalar_prefetch = 0 : i64, scratch_operands = 0 : i64, tpu.core_type = #tpu.core_type<tc>, window_params = [{transform_indices = @transform_0, window_bounds = array<i64: 2, 8, 32>}, {transform_indices = @transform_1, window_bounds = array<i64: 2, 8, 32>}, {transform_indices = @transform_2, window_bounds = array<i64: 2, 8, 32>}, {transform_indices = @transform_3, window_bounds = array<i64: 2, 32>}]} {
    %c0 = arith.constant 0 : index
    %c0_0 = arith.constant 0 : index
    %c0_1 = arith.constant 0 : index
    %0 = vector.load %arg1[%c0, %c0_0, %c0_1] : memref<2x8x32xf32, #tpu.memory_space<vmem>>, vector<2x8x32xf32>
    %c0_2 = arith.constant 0 : index
    %c0_3 = arith.constant 0 : index
    %c0_4 = arith.constant 0 : index
    %1 = vector.load %arg2[%c0_2, %c0_3, %c0_4] : memref<2x8x32xf32, #tpu.memory_space<vmem>>, vector<2x8x32xf32>
    %c0_5 = arith.constant 0 : index
    %c0_6 = arith.constant 0 : index
    %c0_7 = arith.constant 0 : index
    %2 = vector.load %arg3[%c0_5, %c0_6, %c0_7] : memref<2x8x32xf32, #tpu.memory_space<vmem>>, vector<2x8x32xf32>
    %cst = arith.constant dense<0.000000e+00> : vector<2x32xf32>
    %3 = vector.multi_reduction <add>, %1, %cst [1] : vector<2x8x32xf32> to vector<2x32xf32>
    %4 = vector.shape_cast %3 : vector<2x32xf32> to vector<2x1x32xf32>
    %cst_8 = arith.constant 0.176776692 : f32
    %5 = vector.broadcast %cst_8 : f32 to vector<2x1x32xf32>
    %6 = arith.mulf %4, %5 : vector<2x1x32xf32>
    %7 = vector.broadcast %6 : vector<2x1x32xf32> to vector<2x8x32xf32>
    %8 = arith.mulf %0, %7 : vector<2x8x32xf32>
    %cst_9 = arith.constant dense<0.000000e+00> : vector<2x8xf32>
    %9 = vector.multi_reduction <add>, %8, %cst_9 [2] : vector<2x8x32xf32> to vector<2x8xf32>
    %10 = vector.shape_cast %9 : vector<2x8xf32> to vector<2x8x1xf32>
    %cst_10 = arith.constant dense<0xFF800000> : vector<2x1xf32>
    %11 = vector.multi_reduction <maximumf>, %10, %cst_10 [1] : vector<2x8x1xf32> to vector<2x1xf32>
    %12 = vector.shape_cast %11 : vector<2x1xf32> to vector<2x1x1xf32>
    %13 = vector.broadcast %12 : vector<2x1x1xf32> to vector<2x8x1xf32>
    %14 = arith.subf %10, %13 : vector<2x8x1xf32>
    %15 = math.exp %14 : vector<2x8x1xf32>
    %cst_11 = arith.constant dense<0.000000e+00> : vector<2x1xf32>
    %16 = vector.multi_reduction <add>, %15, %cst_11 [1] : vector<2x8x1xf32> to vector<2x1xf32>
    %17 = vector.shape_cast %16 : vector<2x1xf32> to vector<2x1x1xf32>
    %18 = tpu.reciprocal %17 {approx = true} : vector<2x1x1xf32> -> vector<2x1x1xf32>
    %19 = arith.mulf %17, %18 : vector<2x1x1xf32>
    %cst_12 = arith.constant 2.000000e+00 : f32
    %20 = vector.broadcast %cst_12 : f32 to vector<2x1x1xf32>
    %21 = arith.subf %20, %19 : vector<2x1x1xf32>
    %22 = arith.mulf %18, %21 : vector<2x1x1xf32>
    %23 = vector.broadcast %22 : vector<2x1x1xf32> to vector<2x8x1xf32>
    %24 = arith.mulf %15, %23 : vector<2x8x1xf32>
    %25 = vector.broadcast %24 : vector<2x8x1xf32> to vector<2x8x32xf32>
    %26 = arith.mulf %25, %2 : vector<2x8x32xf32>
    %cst_13 = arith.constant dense<0.000000e+00> : vector<2x32xf32>
    %27 = vector.multi_reduction <add>, %26, %cst_13 [1] : vector<2x8x32xf32> to vector<2x32xf32>
    %c0_14 = arith.constant 0 : index
    %c0_15 = arith.constant 0 : index
    %28 = vector.load %arg4[%c0_14, %c0_15] : memref<2x32xf32, #tpu.memory_space<vmem>>, vector<2x32xf32>
    tpu.vector_store %arg4[%c0_14, %c0_15], %27 {strides = array<i32>} : memref<2x32xf32, #tpu.memory_space<vmem>>, vector<2x32xf32>,
    return
  }
  func.func @transform_0(%arg0: i32) -> (i32, i32, i32) {
    %c0_i32 = arith.constant 0 : i32
    %c0_i32_0 = arith.constant 0 : i32
    %c0_i32_1 = arith.constant 0 : i32
    return %arg0, %c0_i32, %c0_i32_0 : i32, i32, i32
  }
  func.func @transform_1(%arg0: i32) -> (i32, i32, i32) {
    %c0_i32 = arith.constant 0 : i32
    %c0_i32_0 = arith.constant 0 : i32
    %c0_i32_1 = arith.constant 0 : i32
    return %arg0, %c0_i32, %c0_i32_0 : i32, i32, i32
  }
  func.func @transform_2(%arg0: i32) -> (i32, i32, i32) {
    %c0_i32 = arith.constant 0 : i32
    %c0_i32_0 = arith.constant 0 : i32
    %c0_i32_1 = arith.constant 0 : i32
    return %arg0, %c0_i32, %c0_i32_0 : i32, i32, i32
  }
  func.func @transform_3(%arg0: i32) -> (i32, i32) {
    %c0_i32 = arith.constant 0 : i32
    %c0_i32_0 = arith.constant 0 : i32
    return %arg0, %c0_i32 : i32, i32
  }
}

</mosaic_0001>

<llo_original>
// kernel: tpu_custom_call.1
$region0: #{tpu_custom_call.1}
  #allocation0 [shape = 'u32[]', space=smem, size = 0x4, offset = 0x4, fixed_abs, tag = 'smem constant byte address 0x4 - core index']
  #allocation1 [shape = 'u32[144,128]{1,0:T(1,128)}', space=vmem, size = 0x12000, scoped, tag = 'internal scratch']
  %s0 = inlined_call_operand.hbm [shape: f32[2,8,32], index: 0, kind: input, shape index: {}]
  %s1 = inlined_call_operand.hbm [shape: f32[2,8,32], index: 1, kind: input, shape index: {}]
  %s2 = inlined_call_operand.hbm [shape: f32[2,8,32], index: 2, kind: input, shape index: {}]
  %s3 = inlined_call_operand.hbm [shape: f32[2,32], index: 3, kind: output, shape index: {}]
  %s4 = sld [smem:[#allocation0]]
  $region34: #{tpu_custom_call.1} parent=0
    _
  %s6 = ssub.s32 1, %s4
  %s7 = scalar_select 0, %s6, %s4
  $region1: #{tpu_custom_call.1} parent=0
    #allocation2 [shape = 'u8[8192]{0}', space=vmem, size = 0x2000, scoped, tag = 'input window, operand 0, single buffered']
    #allocation3 [shape = 's32[1]{0}', space=sflag, size = 0x4, scoped, tag = 'scoped memory for tpu_custom_call.1']
    #allocation4 [shape = 's32[1]{0}', space=sflag, size = 0x4, scoped, tag = 'scoped memory for tpu_custom_call.1']
    #allocation5 [shape = 'u8[8192]{0}', space=vmem, size = 0x2000, scoped, tag = 'input window, operand 1, single buffered']
    #allocation6 [shape = 's32[1]{0}', space=sflag, size = 0x4, scoped, tag = 'scoped memory for tpu_custom_call.1']
    #allocation7 [shape = 'u8[8192]{0}', space=vmem, size = 0x2000, scoped, tag = 'input window, operand 2, single buffered']
    #allocation8 [shape = 'u8[1024]{0}', space=vmem, size = 0x400, scoped, tag = 'output window, operand 0, single buffered']
    %8 = vsyncpa [#allocation3], 0
    %9 = vsyncpa [#allocation6], 0
    %10 = vsyncpa [#allocation4], 0
    // Predicated region
    $region2: #{tpu_custom_call.1} parent=1 // pred_check
      _
    $region3: #{tpu_custom_call.1} parent=1 // pred_check_branch
      %12 = sbr.rel (0) target = $region5
    $region4: #{tpu_custom_call.1} parent=1 // pred_region
      %s14 = ssub.s32 256, 256
      %15 = vsyncadd [#allocation3], %s14
      %s16 = sshll.u32 [#allocation2], 4
      %s17 = int_to_ptr.vmem [resolvable:$true] %s16
      %22 = dma.hbm_to_vmem [thread:$0]  %s0, 256, %s17, [#allocation3], 128, 128, 8
    $region5: #{tpu_custom_call.1} parent=1 // pred_fallthru
      _
    // Predicated region
    $region6: #{tpu_custom_call.1} parent=1 // pred_check
      _
    $region7: #{tpu_custom_call.1} parent=1 // pred_check_branch
      %24 = sbr.rel (0) target = $region9
    $region8: #{tpu_custom_call.1} parent=1 // pred_region
      %s26 = ssub.s32 256, 256
      %27 = vsyncadd [#allocation6], %s26
      %s28 = sshll.u32 [#allocation5], 4
      %s29 = int_to_ptr.vmem [resolvable:$true] %s28
      %34 = dma.hbm_to_vmem [thread:$0]  %s1, 256, %s29, [#allocation6], 128, 128, 8
    $region9: #{tpu_custom_call.1} parent=1 // pred_fallthru
      _
    // Predicated region
    $region10: #{tpu_custom_call.1} parent=1 // pred_check
      _
    $region11: #{tpu_custom_call.1} parent=1 // pred_check_branch
      %36 = sbr.rel (0) target = $region13
    $region12: #{tpu_custom_call.1} parent=1 // pred_region
      %s38 = ssub.s32 256, 256
      %39 = vsyncadd [#allocation6], %s38
      %s40 = sshll.u32 [#allocation7], 4
      %s41 = int_to_ptr.vmem [resolvable:$true] %s40
      %46 = dma.hbm_to_vmem [thread:$0]  %s2, 256, %s41, [#allocation6], 128, 128, 8
    $region13: #{tpu_custom_call.1} parent=1 // pred_fallthru
      _
    // Predicated region
    $region14: #{tpu_custom_call.1} parent=1 // pred_check
      _
    $region15: #{tpu_custom_call.1} parent=1 // pred_check_branch
      %48 = sbr.rel (0) target = $region17
    $region16: #{tpu_custom_call.1} parent=1 // pred_region
      %49 = dma.done [#allocation3], 256
    $region17: #{tpu_custom_call.1} parent=1 // pred_fallthru
      _
    // Predicated region
    $region18: #{tpu_custom_call.1} parent=1 // pred_check
      _
    $region19: #{tpu_custom_call.1} parent=1 // pred_check_branch
      %51 = sbr.rel (0) target = $region21
    $region20: #{tpu_custom_call.1} parent=1 // pred_region
      %52 = dma.done [#allocation6], 256
    $region21: #{tpu_custom_call.1} parent=1 // pred_fallthru
      _
    // Predicated region
    $region22: #{tpu_custom_call.1} parent=1 // pred_check
      _
    $region23: #{tpu_custom_call.1} parent=1 // pred_check_branch
      %54 = sbr.rel (0) target = $region25
    $region24: #{tpu_custom_call.1} parent=1 // pred_region
      %55 = dma.done [#allocation6], 256
    $region25: #{tpu_custom_call.1} parent=1 // pred_fallthru
      _
    %v56 = vld [vmem:[#allocation2] sm:$0xff]
    %v57 = vld [vmem:[#allocation2 + $0x8] sm:$0xff]
    %v58 = vld [vmem:[#allocation5] sm:$0xff]
    %v59 = vld [vmem:[#allocation5 + $0x8] sm:$0xff]
    %v60 = vld [vmem:[#allocation7] sm:$0xff]
    %v61 = vld [vmem:[#allocation7 + $0x8] sm:$0xff]
    %vm62 = vcmask 261120
    %v63 = vsel %vm62, %v58, 0.0
    %v64 = vrot.slane %v63, 4
    %v65 = vadd.f32 %v63, %v64
    %v66 = vrot.slane %v65, 2
    %v67 = vadd.f32 %v65, %v66
    %v68 = vrot.slane %v67, 1
    %v69 = vadd.f32 %v67, %v68
    %v70 = vsel %vm62, %v59, 0.0
    %v71 = vrot.slane %v70, 4
    %v72 = vadd.f32 %v70, %v71
    %v73 = vrot.slane %v72, 2
    %v74 = vadd.f32 %v72, %v73
    %v75 = vrot.slane %v74, 1
    %v76 = vadd.f32 %v74, %v75
    %v77 = vmul.f32 %v69, 0.17677669
    %v78 = vmul.f32 %v76, 0.17677669
    %v79 = vmul.f32 %v56, %v77
    %v80 = vmul.f32 %v57, %v78
    %v81 = vsel %vm62, %v79, 0.0
    %82 = vadd.xlane.f32.xlu0 %v81
    %v83 = vpop.xlane.xlu0 %82
    %v84 = vsel %vm62, %v80, 0.0
    %85 = vadd.xlane.f32.xlu0 %v84
    %v86 = vpop.xlane.xlu0 %85
    %v87 = vrot.slane %v83, 4
    %v88 = vmax.f32 %v83, %v87
    %v89 = vrot.slane %v88, 2
    %v90 = vmax.f32 %v88, %v89
    %v91 = vrot.slane %v90, 1
    %v92 = vmax.f32 %v90, %v91
    %v93 = vrot.slane %v86, 4
    %v94 = vmax.f32 %v86, %v93
    %v95 = vrot.slane %v94, 2
    %v96 = vmax.f32 %v94, %v95
    %v97 = vrot.slane %v96, 1
    %v98 = vmax.f32 %v96, %v97
    %v99 = vsub.f32 %v83, %v92
    %v100 = vsub.f32 %v86, %v98
    %v101 = vmul.f32 %v99, 1.442695
    %v102 = vpow.pop %v101
    %v103 = vmul.f32 %v100, 1.442695
    %v104 = vpow.pop %v103
    %v105 = vrot.slane %v102, 4
    %v106 = vadd.f32 %v102, %v105
    %v107 = vrot.slane %v106, 2
    %v108 = vadd.f32 %v106, %v107
    %v109 = vrot.slane %v108, 1
    %v110 = vadd.f32 %v108, %v109
    %v111 = vrot.slane %v104, 4
    %v112 = vadd.f32 %v104, %v111
    %v113 = vrot.slane %v112, 2
    %v114 = vadd.f32 %v112, %v113
    %v115 = vrot.slane %v114, 1
    %v116 = vadd.f32 %v114, %v115
    %v117 = vrcp.pop %v110
    %v118 = vrcp.pop %v116
    %v119 = vmul.f32 %v110, %v117
    %v120 = vmul.f32 %v116, %v118
    %v121 = vsub.f32 2.0, %v119
    %v122 = vsub.f32 2.0, %v120
    %v123 = vmul.f32 %v117, %v121
    %v124 = vmul.f32 %v118, %v122
    %v125 = vmul.f32 %v102, %v123
    %v126 = vmul.f32 %v104, %v124
    %v127 = vmul.f32 %v125, %v60
    %v128 = vmul.f32 %v126, %v61
    %v129 = vsel %vm62, %v127, 0.0
    %v130 = vrot.slane %v129, 4
    %v131 = vadd.f32 %v129, %v130
    %v132 = vrot.slane %v131, 2
    %v133 = vadd.f32 %v131, %v132
    %v134 = vrot.slane %v133, 1
    %v135 = vadd.f32 %v133, %v134
    %v136 = vsel %vm62, %v128, 0.0
    %v137 = vrot.slane %v136, 4
    %v138 = vadd.f32 %v136, %v137
    %v139 = vrot.slane %v138, 2
    %v140 = vadd.f32 %v138, %v139
    %v141 = vrot.slane %v140, 1
    %v142 = vadd.f32 %v140, %v141
    %vm145 = vcmask 1041409
    %v146 = vsel %vm145, %v142, %v135
    %vm148 = vcmask 254976
    %149 = vst.msk [vmem:[#allocation8] sm:$0x3] %vm148, %v146
    // Predicated region
    $region26: #{tpu_custom_call.1} parent=1 // pred_check
      _
    $region27: #{tpu_custom_call.1} parent=1 // pred_check_branch
      %151 = sbr.rel (0) target = $region29
    $region28: #{tpu_custom_call.1} parent=1 // pred_region
      %s153 = ssub.s32 32, 32
      %154 = vsyncadd [#allocation4], %s153
      %s156 = sshll.u32 [#allocation8], 4
      %s157 = int_to_ptr.vmem [resolvable:$true] %s156
      %159 = dma.vmem_to_hbm [thread:$0]  %s157, 32, %s3, [#allocation4]
    $region29: #{tpu_custom_call.1} parent=1 // pred_fallthru
      _
    // Predicated region
    $region30: #{tpu_custom_call.1} parent=1 // pred_check
      _
    $region31: #{tpu_custom_call.1} parent=1 // pred_check_branch
      %161 = sbr.rel (0) target = $region33
    $region32: #{tpu_custom_call.1} parent=1 // pred_region
      %162 = dma.done [#allocation4], 32
    $region33: #{tpu_custom_call.1} parent=1 // pred_fallthru
      _
    %163 = vsyncpa [#allocation3], 1
    %164 = vsyncpa [#allocation6], 1
    %165 = vsyncpa [#allocation4], 1

</llo_original>
